<compile_context>
chip_gen: v5e
topology: v5e:2x2
jax: 0.10.0
libtpu: 0.0.40
codegen_flags: <defaults>
</compile_context>

<pallas_src>
import jax
import jax.numpy as jnp
from jax.experimental import pallas as pl
from jax.experimental.pallas import tpu as pltpu

INPUT_DIM = 2
HIDDEN_DIM = 32
OUTPUT_DIM = 1
HIDDEN_LAYERS = 4 - 1   # hidden_layer - 1 Linear+Tanh blocks

DPAD = 128              # padded hidden-feature width (sublane-resident dim)
DEFAULT_BLOCK_N = 512   # batch tile on the lane axis (multiple of 256)


def _round_up(x, m):
    return ((x + m - 1) // m) * m


def _mlp_kernel(x_ref,
                w1_ref, b1_ref,
                w2_ref, b2_ref,
                w3_ref, b3_ref,
                wf_ref, bf_ref,
                o_ref):
    """One batch tile. Activations are (DPAD, TN) f32, batch on lanes."""
    # ---- Layer 1: K=2 contraction as two broadcast FMAs (VPU) -------------
    x0 = x_ref[0:1, :]                      # (1, TN)
    x1 = x_ref[1:2, :]                      # (1, TN)
    h = jnp.tanh(w1_ref[:, 0:1] * x0        # (DPAD,1)*(1,TN) -> (DPAD,TN)
                 + w1_ref[:, 1:2] * x1
                 + b1_ref[...])             # (DPAD,1) bias, lane-broadcast

    # ---- Layers 2 & 3: 128x128 MXU matmuls ---------------------------------
    h = jnp.tanh(jnp.dot(w2_ref[...], h, preferred_element_type=jnp.float32)
                 + b2_ref[...])
    h = jnp.tanh(jnp.dot(w3_ref[...], h, preferred_element_type=jnp.float32)
                 + b3_ref[...])

    # ---- Final layer: output_dim=1 -> sublane reduction (XLU) --------------
    o_ref[...] = (jnp.sum(wf_ref[...] * h, axis=0, keepdims=True)
                  + bf_ref[...])            # (1, TN)


def _pack_params(params):
    """Transpose + zero-pad params to the kernel's resident layout."""
    (w1, b1), (w2, b2), (w3, b3), (wf, bf) = params
    w1t = jnp.zeros((DPAD, INPUT_DIM), jnp.float32).at[:HIDDEN_DIM, :].set(w1.T)
    b1p = jnp.zeros((DPAD, 1), jnp.float32).at[:HIDDEN_DIM, 0].set(b1)
    w2t = jnp.zeros((DPAD, DPAD), jnp.float32).at[:HIDDEN_DIM, :HIDDEN_DIM].set(w2.T)
    b2p = jnp.zeros((DPAD, 1), jnp.float32).at[:HIDDEN_DIM, 0].set(b2)
    w3t = jnp.zeros((DPAD, DPAD), jnp.float32).at[:HIDDEN_DIM, :HIDDEN_DIM].set(w3.T)
    b3p = jnp.zeros((DPAD, 1), jnp.float32).at[:HIDDEN_DIM, 0].set(b3)
    wfp = jnp.zeros((DPAD, 1), jnp.float32).at[:HIDDEN_DIM, :OUTPUT_DIM].set(wf)
    bfp = bf.reshape(1, 1).astype(jnp.float32)
    return (w1t, b1p, w2t, b2p, w3t, b3p, wfp, bfp)


def mlp_forward(x, params, block_n=DEFAULT_BLOCK_N):
    """x: (N, INPUT_DIM) float32. params: list of (W, b) with W (in, out)."""
    n = x.shape[0]
    block_n = _round_up(block_n, 128)
    tn = max(128, min(block_n, _round_up(n, 128)))   # shrink tile for tiny N
    n_pad = _round_up(n, tn)

    # Batch-on-lanes HBM layout: dense (2, n_pad) input.
    x_t = jnp.zeros((INPUT_DIM, n_pad), jnp.float32).at[:, :n].set(
        x.astype(jnp.float32).T)

    packed = _pack_params(params)

    const = lambda i: (0, 0)
    in_specs = [
        pl.BlockSpec((INPUT_DIM, tn), lambda i: (0, i)),   # x tile
        pl.BlockSpec((DPAD, INPUT_DIM), const),            # w1^T
        pl.BlockSpec((DPAD, 1), const),                    # b1
        pl.BlockSpec((DPAD, DPAD), const),                 # w2^T
        pl.BlockSpec((DPAD, 1), const),                    # b2
        pl.BlockSpec((DPAD, DPAD), const),                 # w3^T
        pl.BlockSpec((DPAD, 1), const),                    # b3
        pl.BlockSpec((DPAD, 1), const),                    # wf
        pl.BlockSpec((1, 1), const),                       # bf
    ]

    out_t = pl.pallas_call(
        _mlp_kernel,
        out_shape=jax.ShapeDtypeStruct((OUTPUT_DIM, n_pad), jnp.float32),
        grid_spec=pltpu.PrefetchScalarGridSpec(
            num_scalar_prefetch=0,
            grid=(n_pad // tn,),
            in_specs=in_specs,
            out_specs=pl.BlockSpec((OUTPUT_DIM, tn), lambda i: (0, i)),
        ),
        compiler_params=pltpu.CompilerParams(
            dimension_semantics=("parallel",)),
    )(x_t, *packed)

    return out_t[:, :n].T    # (n, OUTPUT_DIM)


def init_params(key):
    """Deterministic init mirroring nn.Linear default (U[-1/sqrt(fan_in), ..])."""
    dims = [INPUT_DIM] + [HIDDEN_DIM] * HIDDEN_LAYERS + [OUTPUT_DIM]
    params = []
    for i in range(len(dims) - 1):
        fan_in, fan_out = dims[i], dims[i + 1]
        key, kw, kb = jax.random.split(key, 3)
        bound = 1.0 / jnp.sqrt(fan_in)
        w = jax.random.uniform(kw, (fan_in, fan_out), jnp.float32,
                               minval=-bound, maxval=bound)
        b = jax.random.uniform(kb, (fan_out,), jnp.float32,
                               minval=-bound, maxval=bound)
        params.append((w, b))
    return params


def mlp_reference(x, params):
    h = x
    for (w, b) in params[:-1]:
        h = jnp.tanh(h @ w + b)
    w, b = params[-1]
    return h @ w + b


if __name__ == "__main__":
    key = jax.random.PRNGKey(0)
    key, kx, kx2 = jax.random.split(key, 3)
    params = init_params(key)

    # Small demo batch.
    N = 8
    x = jax.random.normal(kx, (N, INPUT_DIM), jnp.float32)
    out = jax.block_until_ready(mlp_forward(x, params))
    ref = mlp_reference(x, params)
    assert out.shape == (N, OUTPUT_DIM)
    assert jnp.allclose(out, ref, atol=1e-5, rtol=1e-5)

    # Larger batch to exercise the multi-tile (grid > 1) path with TN=512.
    N2 = 700
    x2 = jax.random.normal(kx2, (N2, INPUT_DIM), jnp.float32)
    out2 = jax.block_until_ready(mlp_forward(x2, params))
    ref2 = mlp_reference(x2, params)
    assert out2.shape == (N2, OUTPUT_DIM)
    assert jnp.allclose(out2, ref2, atol=1e-5, rtol=1e-5)

    print("KERNEL_OK")
</pallas_src>

<mosaic_0001>
module attributes {stable_mosaic.version = 11 : i64} {
  func.func @_mlp_kernel(%arg0: i32, %arg1: memref<2x128xf32, #tpu.memory_space<vmem>>, %arg2: memref<128x2xf32, #tpu.memory_space<vmem>>, %arg3: memref<128x1xf32, #tpu.memory_space<vmem>>, %arg4: memref<128x128xf32, #tpu.memory_space<vmem>>, %arg5: memref<128x1xf32, #tpu.memory_space<vmem>>, %arg6: memref<128x128xf32, #tpu.memory_space<vmem>>, %arg7: memref<128x1xf32, #tpu.memory_space<vmem>>, %arg8: memref<128x1xf32, #tpu.memory_space<vmem>>, %arg9: memref<1x1xf32, #tpu.memory_space<vmem>>, %arg10: memref<1x128xf32, #tpu.memory_space<vmem>>) attributes {dimension_semantics = [#tpu.dimension_semantics<parallel>], iteration_bounds = array<i64: 1>, scalar_prefetch = 0 : i64, scratch_operands = 0 : i64, tpu.core_type = #tpu.core_type<tc>, window_params = [{transform_indices = @transform_0, window_bounds = array<i64: 2, 128>}, {pipeline_mode = #tpu.pipeline_mode<synchronous>, transform_indices = @transform_1, window_bounds = array<i64: 128, 2>}, {pipeline_mode = #tpu.pipeline_mode<synchronous>, transform_indices = @transform_2, window_bounds = array<i64: 128, 1>}, {pipeline_mode = #tpu.pipeline_mode<synchronous>, transform_indices = @transform_3, window_bounds = array<i64: 128, 128>}, {pipeline_mode = #tpu.pipeline_mode<synchronous>, transform_indices = @transform_4, window_bounds = array<i64: 128, 1>}, {pipeline_mode = #tpu.pipeline_mode<synchronous>, transform_indices = @transform_5, window_bounds = array<i64: 128, 128>}, {pipeline_mode = #tpu.pipeline_mode<synchronous>, transform_indices = @transform_6, window_bounds = array<i64: 128, 1>}, {pipeline_mode = #tpu.pipeline_mode<synchronous>, transform_indices = @transform_7, window_bounds = array<i64: 128, 1>}, {pipeline_mode = #tpu.pipeline_mode<synchronous>, transform_indices = @transform_8, window_bounds = array<i64: 1, 1>}, {transform_indices = @transform_9, window_bounds = array<i64: 1, 128>}]} {
    %c0 = arith.constant 0 : index
    %c0_0 = arith.constant 0 : index
    %0 = vector.load %arg1[%c0, %c0_0] : memref<2x128xf32, #tpu.memory_space<vmem>>, vector<1x128xf32>
    %c1 = arith.constant 1 : index
    %c0_1 = arith.constant 0 : index
    %1 = vector.load %arg1[%c1, %c0_1] : memref<2x128xf32, #tpu.memory_space<vmem>>, vector<1x128xf32>
    %c0_2 = arith.constant 0 : index
    %c0_3 = arith.constant 0 : index
    %2 = vector.load %arg2[%c0_2, %c0_3] : memref<128x2xf32, #tpu.memory_space<vmem>>, vector<128x1xf32>
    %3 = vector.broadcast %2 : vector<128x1xf32> to vector<128x128xf32>
    %4 = vector.broadcast %0 : vector<1x128xf32> to vector<128x128xf32>
    %5 = arith.mulf %3, %4 : vector<128x128xf32>
    %c0_4 = arith.constant 0 : index
    %c1_5 = arith.constant 1 : index
    %6 = vector.load %arg2[%c0_4, %c1_5] : memref<128x2xf32, #tpu.memory_space<vmem>>, vector<128x1xf32>
    %7 = vector.broadcast %6 : vector<128x1xf32> to vector<128x128xf32>
    %8 = vector.broadcast %1 : vector<1x128xf32> to vector<128x128xf32>
    %9 = arith.mulf %7, %8 : vector<128x128xf32>
    %10 = arith.addf %5, %9 : vector<128x128xf32>
    %c0_6 = arith.constant 0 : index
    %c0_7 = arith.constant 0 : index
    %11 = vector.load %arg3[%c0_6, %c0_7] : memref<128x1xf32, #tpu.memory_space<vmem>>, vector<128x1xf32>
    %12 = vector.broadcast %11 : vector<128x1xf32> to vector<128x128xf32>
    %13 = arith.addf %10, %12 : vector<128x128xf32>
    %14 = math.tanh %13 : vector<128x128xf32>
    %c0_8 = arith.constant 0 : index
    %c0_9 = arith.constant 0 : index
    %15 = vector.load %arg4[%c0_8, %c0_9] : memref<128x128xf32, #tpu.memory_space<vmem>>, vector<128x128xf32>
    %cst = arith.constant dense<0.000000e+00> : vector<128x128xf32>
    %16 = tpu.matmul %15, %14, %cst {dimension_numbers = #tpu.dot_dimension_numbers<[1], [0], [0], [1], [0, 0, 1, 1], [], []>} : vector<128x128xf32>, vector<128x128xf32>, vector<128x128xf32> -> vector<128x128xf32>
    %c0_10 = arith.constant 0 : index
    %c0_11 = arith.constant 0 : index
    %17 = vector.load %arg5[%c0_10, %c0_11] : memref<128x1xf32, #tpu.memory_space<vmem>>, vector<128x1xf32>
    %18 = vector.broadcast %17 : vector<128x1xf32> to vector<128x128xf32>
    %19 = arith.addf %16, %18 : vector<128x128xf32>
    %20 = math.tanh %19 : vector<128x128xf32>
    %c0_12 = arith.constant 0 : index
    %c0_13 = arith.constant 0 : index
    %21 = vector.load %arg6[%c0_12, %c0_13] : memref<128x128xf32, #tpu.memory_space<vmem>>, vector<128x128xf32>
    %cst_14 = arith.constant dense<0.000000e+00> : vector<128x128xf32>
    %22 = tpu.matmul %21, %20, %cst_14 {dimension_numbers = #tpu.dot_dimension_numbers<[1], [0], [0], [1], [0, 0, 1, 1], [], []>} : vector<128x128xf32>, vector<128x128xf32>, vector<128x128xf32> -> vector<128x128xf32>
    %c0_15 = arith.constant 0 : index
    %c0_16 = arith.constant 0 : index
    %23 = vector.load %arg7[%c0_15, %c0_16] : memref<128x1xf32, #tpu.memory_space<vmem>>, vector<128x1xf32>
    %24 = vector.broadcast %23 : vector<128x1xf32> to vector<128x128xf32>
    %25 = arith.addf %22, %24 : vector<128x128xf32>
    %26 = math.tanh %25 : vector<128x128xf32>
    %c0_17 = arith.constant 0 : index
    %c0_18 = arith.constant 0 : index
    %27 = vector.load %arg8[%c0_17, %c0_18] : memref<128x1xf32, #tpu.memory_space<vmem>>, vector<128x1xf32>
    %28 = vector.broadcast %27 : vector<128x1xf32> to vector<128x128xf32>
    %29 = arith.mulf %28, %26 : vector<128x128xf32>
    %cst_19 = arith.constant dense<0.000000e+00> : vector<128xf32>
    %30 = vector.multi_reduction <add>, %29, %cst_19 [0] : vector<128x128xf32> to vector<128xf32>
    %31 = vector.shape_cast %30 : vector<128xf32> to vector<1x128xf32>
    %c0_20 = arith.constant 0 : index
    %c0_21 = arith.constant 0 : index
    %32 = vector.load %arg9[%c0_20, %c0_21] : memref<1x1xf32, #tpu.memory_space<vmem>>, vector<1x1xf32>
    %33 = vector.broadcast %32 : vector<1x1xf32> to vector<1x128xf32>
    %34 = arith.addf %31, %33 : vector<1x128xf32>
    %c0_22 = arith.constant 0 : index
    %c0_23 = arith.constant 0 : index
    %35 = vector.load %arg10[%c0_22, %c0_23] : memref<1x128xf32, #tpu.memory_space<vmem>>, vector<1x128xf32>
    tpu.vector_store %arg10[%c0_22, %c0_23], %34 {strides = array<i32>} : memref<1x128xf32, #tpu.memory_space<vmem>>, vector<1x128xf32>,
    return
  }
  func.func @transform_0(%arg0: i32) -> (i32, i32) {
    %c0_i32 = arith.constant 0 : i32
    %c0_i32_0 = arith.constant 0 : i32
    return %c0_i32, %arg0 : i32, i32
  }
  func.func @transform_1(%arg0: i32) -> (i32, i32) {
    %c0_i32 = arith.constant 0 : i32
    %c0_i32_0 = arith.constant 0 : i32
    %c0_i32_1 = arith.constant 0 : i32
    return %c0_i32, %c0_i32_0 : i32, i32
  }
  func.func @transform_2(%arg0: i32) -> (i32, i32) {
    %c0_i32 = arith.constant 0 : i32
    %c0_i32_0 = arith.constant 0 : i32
    %c0_i32_1 = arith.constant 0 : i32
    return %c0_i32, %c0_i32_0 : i32, i32
  }
  func.func @transform_3(%arg0: i32) -> (i32, i32) {
    %c0_i32 = arith.constant 0 : i32
    %c0_i32_0 = arith.constant 0 : i32
    %c0_i32_1 = arith.constant 0 : i32
    return %c0_i32, %c0_i32_0 : i32, i32
  }
  func.func @transform_4(%arg0: i32) -> (i32, i32) {
    %c0_i32 = arith.constant 0 : i32
    %c0_i32_0 = arith.constant 0 : i32
    %c0_i32_1 = arith.constant 0 : i32
    return %c0_i32, %c0_i32_0 : i32, i32
  }
  func.func @transform_5(%arg0: i32) -> (i32, i32) {
    %c0_i32 = arith.constant 0 : i32
    %c0_i32_0 = arith.constant 0 : i32
    %c0_i32_1 = arith.constant 0 : i32
    return %c0_i32, %c0_i32_0 : i32, i32
  }
  func.func @transform_6(%arg0: i32) -> (i32, i32) {
    %c0_i32 = arith.constant 0 : i32
    %c0_i32_0 = arith.constant 0 : i32
    %c0_i32_1 = arith.constant 0 : i32
    return %c0_i32, %c0_i32_0 : i32, i32
  }
  func.func @transform_7(%arg0: i32) -> (i32, i32) {
    %c0_i32 = arith.constant 0 : i32
    %c0_i32_0 = arith.constant 0 : i32
    %c0_i32_1 = arith.constant 0 : i32
    return %c0_i32, %c0_i32_0 : i32, i32
  }
  func.func @transform_8(%arg0: i32) -> (i32, i32) {
    %c0_i32 = arith.constant 0 : i32
    %c0_i32_0 = arith.constant 0 : i32
    %c0_i32_1 = arith.constant 0 : i32
    return %c0_i32, %c0_i32_0 : i32, i32
  }
  func.func @transform_9(%arg0: i32) -> (i32, i32) {
    %c0_i32 = arith.constant 0 : i32
    %c0_i32_0 = arith.constant 0 : i32
    return %c0_i32, %arg0 : i32, i32
  }
}

</mosaic_0001>

<llo_original>
// kernel: tpu_custom_call.1
$region0: #{tpu_custom_call.1}
  #allocation0 [shape = 'u32[]', space=smem, size = 0x4, offset = 0x4, fixed_abs, tag = 'smem constant byte address 0x4 - core index']
  #allocation1 [shape = 'u32[72,128]{1,0:T(1,128)}', space=vmem, size = 0x9000, scoped, tag = 'internal scratch']
  #allocation2 [shape = 'f32[1,1]{1,0:T(1,128)S(1)}', space=vmem, size = 0x200, scoped, tag = 'scoped memory for tpu_custom_call.1']
  %s0 = inlined_call_operand.vmem [shape: f32[2,128], index: 0, kind: input, shape index: {}]
  %s1 = inlined_call_operand.vmem [shape: f32[128,2], index: 1, kind: input, shape index: {}]
  %s2 = inlined_call_operand.vmem [shape: f32[128,1], index: 2, kind: input, shape index: {}]
  %s3 = inlined_call_operand.vmem [shape: f32[128,128], index: 3, kind: input, shape index: {}]
  %s4 = inlined_call_operand.vmem [shape: f32[128,1], index: 4, kind: input, shape index: {}]
  %s5 = inlined_call_operand.vmem [shape: f32[128,128], index: 5, kind: input, shape index: {}]
  %s6 = inlined_call_operand.vmem [shape: f32[128,1], index: 6, kind: input, shape index: {}]
  %s7 = inlined_call_operand.vmem [shape: f32[128,1], index: 7, kind: input, shape index: {}]
  %s8 = inlined_call_operand.<no memory space> [shape: f32[1,1], index: 8, kind: input, shape index: {}]
  %s9 = inlined_call_operand.hbm [shape: f32[1,128], index: 9, kind: output, shape index: {}]
  %s10 = sld [smem:[#allocation0]]
  $region46: #{tpu_custom_call.1} parent=0
    _
  %s12 = ssub.s32 1, %s10
  %s13 = scalar_select 0, %s12, %s10
  %v14 = vstv %s8
  %15 = vst [vmem:[#allocation2] sm:$0x1] %v14
  $region1: #{tpu_custom_call.1} parent=0
    #allocation3 [shape = 'u8[512]{0}', space=vmem, size = 0x400, scoped, tag = 'output window, operand 0, single buffered']
    #allocation4 [shape = 's32[1]{0}', space=sflag, size = 0x4, scoped, tag = 'scoped memory for tpu_custom_call.1']
    %16 = vsyncpa [#allocation4], 0
    // Predicated region
    $region2: #{tpu_custom_call.1} parent=1 // pred_check
      _
    $region3: #{tpu_custom_call.1} parent=1 // pred_check_branch
      %18 = sbr.rel (0) target = $region5
    $region4: #{tpu_custom_call.1} parent=1 // pred_region
      _
    $region5: #{tpu_custom_call.1} parent=1 // pred_fallthru
      _
    // Predicated region
    $region6: #{tpu_custom_call.1} parent=1 // pred_check
      _
    $region7: #{tpu_custom_call.1} parent=1 // pred_check_branch
      %20 = sbr.rel (0) target = $region9
    $region8: #{tpu_custom_call.1} parent=1 // pred_region
      _
    $region9: #{tpu_custom_call.1} parent=1 // pred_fallthru
      _
    // Predicated region
    $region10: #{tpu_custom_call.1} parent=1 // pred_check
      _
    $region11: #{tpu_custom_call.1} parent=1 // pred_check_branch
      %22 = sbr.rel (0) target = $region13
    $region12: #{tpu_custom_call.1} parent=1 // pred_region
      _
    $region13: #{tpu_custom_call.1} parent=1 // pred_fallthru
      _
    // Predicated region
    $region14: #{tpu_custom_call.1} parent=1 // pred_check
      _
    $region15: #{tpu_custom_call.1} parent=1 // pred_check_branch
      %24 = sbr.rel (0) target = $region17
    $region16: #{tpu_custom_call.1} parent=1 // pred_region
      _
    $region17: #{tpu_custom_call.1} parent=1 // pred_fallthru
      _
    // Predicated region
    $region18: #{tpu_custom_call.1} parent=1 // pred_check
      _
    $region19: #{tpu_custom_call.1} parent=1 // pred_check_branch
      %26 = sbr.rel (0) target = $region21
    $region20: #{tpu_custom_call.1} parent=1 // pred_region
      _
    $region21: #{tpu_custom_call.1} parent=1 // pred_fallthru
      _
    // Predicated region
    $region22: #{tpu_custom_call.1} parent=1 // pred_check
      _
    $region23: #{tpu_custom_call.1} parent=1 // pred_check_branch
      %28 = sbr.rel (0) target = $region25
    $region24: #{tpu_custom_call.1} parent=1 // pred_region
      _
    $region25: #{tpu_custom_call.1} parent=1 // pred_fallthru
      _
    // Predicated region
    $region26: #{tpu_custom_call.1} parent=1 // pred_check
      _
    $region27: #{tpu_custom_call.1} parent=1 // pred_check_branch
      %30 = sbr.rel (0) target = $region29
    $region28: #{tpu_custom_call.1} parent=1 // pred_region
      _
    $region29: #{tpu_custom_call.1} parent=1 // pred_fallthru
      _
    // Predicated region
    $region30: #{tpu_custom_call.1} parent=1 // pred_check
      _
    $region31: #{tpu_custom_call.1} parent=1 // pred_check_branch
      %32 = sbr.rel (0) target = $region33
    $region32: #{tpu_custom_call.1} parent=1 // pred_region
      _
    $region33: #{tpu_custom_call.1} parent=1 // pred_fallthru
      _
    // Predicated region
    $region34: #{tpu_custom_call.1} parent=1 // pred_check
      _
    $region35: #{tpu_custom_call.1} parent=1 // pred_check_branch
      %34 = sbr.rel (0) target = $region37
    $region36: #{tpu_custom_call.1} parent=1 // pred_region
      _
    $region37: #{tpu_custom_call.1} parent=1 // pred_fallthru
      _
    %v35 = vld [vmem:[%s0] sm:$0x1]
    %v36 = vld [vmem:[%s0 + $0x1] sm:$0x1]
    %v37 = vld [vmem:[%s1] sm:$0xff]
    %v38 = vld [vmem:[%s1 + $0x8] sm:$0xff]
    %v39 = vld [vmem:[%s1 + $0x10] sm:$0xff]
    %v40 = vld [vmem:[%s1 + $0x18] sm:$0xff]
    %v41 = vld [vmem:[%s1 + $0x20] sm:$0xff]
    %v42 = vld [vmem:[%s1 + $0x28] sm:$0xff]
    %v43 = vld [vmem:[%s1 + $0x30] sm:$0xff]
    %v44 = vld [vmem:[%s1 + $0x38] sm:$0xff]
    %v45 = vld [vmem:[%s1 + $0x40] sm:$0xff]
    %v46 = vld [vmem:[%s1 + $0x48] sm:$0xff]
    %v47 = vld [vmem:[%s1 + $0x50] sm:$0xff]
    %v48 = vld [vmem:[%s1 + $0x58] sm:$0xff]
    %v49 = vld [vmem:[%s1 + $0x60] sm:$0xff]
    %v50 = vld [vmem:[%s1 + $0x68] sm:$0xff]
    %v51 = vld [vmem:[%s1 + $0x70] sm:$0xff]
    %v52 = vld [vmem:[%s1 + $0x78] sm:$0xff]
    %54 = vset.pattern.permute.xlu0 0
    %55 = vperm.xlu0 %54, %v37
    %v56 = vpop.permute.xlu0 %55
    %59 = vset.pattern.permute.xlu0 0
    %60 = vperm.xlu0 %59, %v38
    %v61 = vpop.permute.xlu0 %60
    %64 = vset.pattern.permute.xlu0 0
    %65 = vperm.xlu0 %64, %v39
    %v66 = vpop.permute.xlu0 %65
    %69 = vset.pattern.permute.xlu0 0
    %70 = vperm.xlu0 %69, %v40
    %v71 = vpop.permute.xlu0 %70
    %74 = vset.pattern.permute.xlu0 0
    %75 = vperm.xlu0 %74, %v41
    %v76 = vpop.permute.xlu0 %75
    %79 = vset.pattern.permute.xlu0 0
    %80 = vperm.xlu0 %79, %v42
    %v81 = vpop.permute.xlu0 %80
    %84 = vset.pattern.permute.xlu0 0
    %85 = vperm.xlu0 %84, %v43
    %v86 = vpop.permute.xlu0 %85
    %89 = vset.pattern.permute.xlu0 0
    %90 = vperm.xlu0 %89, %v44
    %v91 = vpop.permute.xlu0 %90
    %94 = vset.pattern.permute.xlu0 0
    %95 = vperm.xlu0 %94, %v45
    %v96 = vpop.permute.xlu0 %95
    %99 = vset.pattern.permute.xlu0 0
    %100 = vperm.xlu0 %99, %v46
    %v101 = vpop.permute.xlu0 %100
    %104 = vset.pattern.permute.xlu0 0
    %105 = vperm.xlu0 %104, %v47
    %v106 = vpop.permute.xlu0 %105
    %109 = vset.pattern.permute.xlu0 0
    %110 = vperm.xlu0 %109, %v48
    %v111 = vpop.permute.xlu0 %110
    %114 = vset.pattern.permute.xlu0 0
    %115 = vperm.xlu0 %114, %v49
    %v116 = vpop.permute.xlu0 %115
    %119 = vset.pattern.permute.xlu0 0
    %120 = vperm.xlu0 %119, %v50
    %v121 = vpop.permute.xlu0 %120
    %124 = vset.pattern.permute.xlu0 0
    %125 = vperm.xlu0 %124, %v51
    %v126 = vpop.permute.xlu0 %125
    %129 = vset.pattern.permute.xlu0 0
    %130 = vperm.xlu0 %129, %v52
    %v131 = vpop.permute.xlu0 %130
    %v133 = vperm.slane %v35, 0
    %v134 = vmul.f32 %v56, %v133
    %v135 = vmul.f32 %v61, %v133
    %v136 = vmul.f32 %v66, %v133
    %v137 = vmul.f32 %v71, %v133
    %v138 = vmul.f32 %v76, %v133
    %v139 = vmul.f32 %v81, %v133
    %v140 = vmul.f32 %v86, %v133
    %v141 = vmul.f32 %v91, %v133
    %v142 = vmul.f32 %v96, %v133
    %v143 = vmul.f32 %v101, %v133
    %v144 = vmul.f32 %v106, %v133
    %v145 = vmul.f32 %v111, %v133
    %v146 = vmul.f32 %v116, %v133
    %v147 = vmul.f32 %v121, %v133
    %v148 = vmul.f32 %v126, %v133
    %v149 = vmul.f32 %v131, %v133
    %150 = vset.pattern.permute.xlu0 1
    %151 = vperm.xlu0 %150, %v37
    %v152 = vpop.permute.xlu0 %151
    %154 = vset.pattern.permute.xlu0 1
    %155 = vperm.xlu0 %154, %v38
    %v156 = vpop.permute.xlu0 %155
    %158 = vset.pattern.permute.xlu0 1
    %159 = vperm.xlu0 %158, %v39
    %v160 = vpop.permute.xlu0 %159
    %162 = vset.pattern.permute.xlu0 1
    %163 = vperm.xlu0 %162, %v40
    %v164 = vpop.permute.xlu0 %163
    %166 = vset.pattern.permute.xlu0 1
    %167 = vperm.xlu0 %166, %v41
    %v168 = vpop.permute.xlu0 %167
    %170 = vset.pattern.permute.xlu0 1
    %171 = vperm.xlu0 %170, %v42
    %v172 = vpop.permute.xlu0 %171
    %174 = vset.pattern.permute.xlu0 1
    %175 = vperm.xlu0 %174, %v43
    %v176 = vpop.permute.xlu0 %175
    %178 = vset.pattern.permute.xlu0 1
    %179 = vperm.xlu0 %178, %v44
    %v180 = vpop.permute.xlu0 %179
    %182 = vset.pattern.permute.xlu0 1
    %183 = vperm.xlu0 %182, %v45
    %v184 = vpop.permute.xlu0 %183
    %186 = vset.pattern.permute.xlu0 1
    %187 = vperm.xlu0 %186, %v46
    %v188 = vpop.permute.xlu0 %187
    %190 = vset.pattern.permute.xlu0 1
    %191 = vperm.xlu0 %190, %v47
    %v192 = vpop.permute.xlu0 %191
    %194 = vset.pattern.permute.xlu0 1
    %195 = vperm.xlu0 %194, %v48
    %v196 = vpop.permute.xlu0 %195
    %198 = vset.pattern.permute.xlu0 1
    %199 = vperm.xlu0 %198, %v49
    %v200 = vpop.permute.xlu0 %199
    %202 = vset.pattern.permute.xlu0 1
    %203 = vperm.xlu0 %202, %v50
    %v204 = vpop.permute.xlu0 %203
    %206 = vset.pattern.permute.xlu0 1
    %207 = vperm.xlu0 %206, %v51
    %v208 = vpop.permute.xlu0 %207
    %210 = vset.pattern.permute.xlu0 1
    %211 = vperm.xlu0 %210, %v52
    %v212 = vpop.permute.xlu0 %211
    %v214 = vperm.slane %v36, 0
    %v215 = vmul.f32 %v152, %v214
    %v216 = vmul.f32 %v156, %v214
    %v217 = vmul.f32 %v160, %v214
    %v218 = vmul.f32 %v164, %v214
    %v219 = vmul.f32 %v168, %v214
    %v220 = vmul.f32 %v172, %v214
    %v221 = vmul.f32 %v176, %v214
    %v222 = vmul.f32 %v180, %v214
    %v223 = vmul.f32 %v184, %v214
    %v224 = vmul.f32 %v188, %v214
    %v225 = vmul.f32 %v192, %v214
    %v226 = vmul.f32 %v196, %v214
    %v227 = vmul.f32 %v200, %v214
    %v228 = vmul.f32 %v204, %v214
    %v229 = vmul.f32 %v208, %v214
    %v230 = vmul.f32 %v212, %v214
    %v231 = vadd.f32 %v134, %v215
    %v232 = vadd.f32 %v135, %v216
    %v233 = vadd.f32 %v136, %v217
    %v234 = vadd.f32 %v137, %v218
    %v235 = vadd.f32 %v138, %v219
    %v236 = vadd.f32 %v139, %v220
    %v237 = vadd.f32 %v140, %v221
    %v238 = vadd.f32 %v141, %v222
    %v239 = vadd.f32 %v142, %v223
    %v240 = vadd.f32 %v143, %v224
    %v241 = vadd.f32 %v144, %v225
    %v242 = vadd.f32 %v145, %v226
    %v243 = vadd.f32 %v146, %v227
    %v244 = vadd.f32 %v147, %v228
    %v245 = vadd.f32 %v148, %v229
    %v246 = vadd.f32 %v149, %v230
    %v247 = vld [vmem:[%s2] sm:$0xff]
    %v248 = vld [vmem:[%s2 + $0x8] sm:$0xff]
    %v249 = vld [vmem:[%s2 + $0x10] sm:$0xff]
    %v250 = vld [vmem:[%s2 + $0x18] sm:$0xff]
    %v251 = vld [vmem:[%s2 + $0x20] sm:$0xff]
    %v252 = vld [vmem:[%s2 + $0x28] sm:$0xff]
    %v253 = vld [vmem:[%s2 + $0x30] sm:$0xff]
    %v254 = vld [vmem:[%s2 + $0x38] sm:$0xff]
    %v255 = vld [vmem:[%s2 + $0x40] sm:$0xff]
    %v256 = vld [vmem:[%s2 + $0x48] sm:$0xff]
    %v257 = vld [vmem:[%s2 + $0x50] sm:$0xff]
    %v258 = vld [vmem:[%s2 + $0x58] sm:$0xff]
    %v259 = vld [vmem:[%s2 + $0x60] sm:$0xff]
    %v260 = vld [vmem:[%s2 + $0x68] sm:$0xff]
    %v261 = vld [vmem:[%s2 + $0x70] sm:$0xff]
    %v262 = vld [vmem:[%s2 + $0x78] sm:$0xff]
    %264 = vset.pattern.permute.xlu0 0
    %265 = vperm.xlu0 %264, %v247
    %v266 = vpop.permute.xlu0 %265
    %269 = vset.pattern.permute.xlu0 0
    %270 = vperm.xlu0 %269, %v248
    %v271 = vpop.permute.xlu0 %270
    %274 = vset.pattern.permute.xlu0 0
    %275 = vperm.xlu0 %274, %v249
    %v276 = vpop.permute.xlu0 %275
    %279 = vset.pattern.permute.xlu0 0
    %280 = vperm.xlu0 %279, %v250
    %v281 = vpop.permute.xlu0 %280
    %284 = vset.pattern.permute.xlu0 0
    %285 = vperm.xlu0 %284, %v251
    %v286 = vpop.permute.xlu0 %285
    %289 = vset.pattern.permute.xlu0 0
    %290 = vperm.xlu0 %289, %v252
    %v291 = vpop.permute.xlu0 %290
    %294 = vset.pattern.permute.xlu0 0
    %295 = vperm.xlu0 %294, %v253
    %v296 = vpop.permute.xlu0 %295
    %299 = vset.pattern.permute.xlu0 0
    %300 = vperm.xlu0 %299, %v254
    %v301 = vpop.permute.xlu0 %300
    %304 = vset.pattern.permute.xlu0 0
    %305 = vperm.xlu0 %304, %v255
    %v306 = vpop.permute.xlu0 %305
    %309 = vset.pattern.permute.xlu0 0
    %310 = vperm.xlu0 %309, %v256
    %v311 = vpop.permute.xlu0 %310
    %314 = vset.pattern.permute.xlu0 0
    %315 = vperm.xlu0 %314, %v257
    %v316 = vpop.permute.xlu0 %315
    %319 = vset.pattern.permute.xlu0 0
    %320 = vperm.xlu0 %319, %v258
    %v321 = vpop.permute.xlu0 %320
    %324 = vset.pattern.permute.xlu0 0
    %325 = vperm.xlu0 %324, %v259
    %v326 = vpop.permute.xlu0 %325
    %329 = vset.pattern.permute.xlu0 0
    %330 = vperm.xlu0 %329, %v260
    %v331 = vpop.permute.xlu0 %330
    %334 = vset.pattern.permute.xlu0 0
    %335 = vperm.xlu0 %334, %v261
    %v336 = vpop.permute.xlu0 %335
    %339 = vset.pattern.permute.xlu0 0
    %340 = vperm.xlu0 %339, %v262
    %v341 = vpop.permute.xlu0 %340
    %v343 = vadd.f32 %v231, %v266
    %v344 = vadd.f32 %v232, %v271
    %v345 = vadd.f32 %v233, %v276
    %v346 = vadd.f32 %v234, %v281
    %v347 = vadd.f32 %v235, %v286
    %v348 = vadd.f32 %v236, %v291
    %v349 = vadd.f32 %v237, %v296
    %v350 = vadd.f32 %v238, %v301
    %v351 = vadd.f32 %v239, %v306
    %v352 = vadd.f32 %v240, %v311
    %v353 = vadd.f32 %v241, %v316
    %v354 = vadd.f32 %v242, %v321
    %v355 = vadd.f32 %v243, %v326
    %v356 = vadd.f32 %v244, %v331
    %v357 = vadd.f32 %v245, %v336
    %v358 = vadd.f32 %v246, %v341
    %v359 = vtanh.pop %v343
    %v360 = vtanh.pop %v344
    %v361 = vtanh.pop %v345
    %v362 = vtanh.pop %v346
    %v363 = vtanh.pop %v347
    %v364 = vtanh.pop %v348
    %v365 = vtanh.pop %v349
    %v366 = vtanh.pop %v350
    %v367 = vtanh.pop %v351
    %v368 = vtanh.pop %v352
    %v369 = vtanh.pop %v353
    %v370 = vtanh.pop %v354
    %v371 = vtanh.pop %v355
    %v372 = vtanh.pop %v356
    %v373 = vtanh.pop %v357
    %v374 = vtanh.pop %v358
    %v375 = vld [vmem:[%s3] sm:$0xff]
    %v376 = vld [vmem:[%s3 + $0x8] sm:$0xff]
    %v377 = vld [vmem:[%s3 + $0x10] sm:$0xff]
    %v378 = vld [vmem:[%s3 + $0x18] sm:$0xff]
    %v379 = vld [vmem:[%s3 + $0x20] sm:$0xff]
    %v380 = vld [vmem:[%s3 + $0x28] sm:$0xff]
    %v381 = vld [vmem:[%s3 + $0x30] sm:$0xff]
    %v382 = vld [vmem:[%s3 + $0x38] sm:$0xff]
    %v383 = vld [vmem:[%s3 + $0x40] sm:$0xff]
    %v384 = vld [vmem:[%s3 + $0x48] sm:$0xff]
    %v385 = vld [vmem:[%s3 + $0x50] sm:$0xff]
    %v386 = vld [vmem:[%s3 + $0x58] sm:$0xff]
    %v387 = vld [vmem:[%s3 + $0x60] sm:$0xff]
    %v388 = vld [vmem:[%s3 + $0x68] sm:$0xff]
    %v389 = vld [vmem:[%s3 + $0x70] sm:$0xff]
    %v390 = vld [vmem:[%s3 + $0x78] sm:$0xff]
    %v391 = vld [vmem:[%s4] sm:$0xff]
    %v392 = vld [vmem:[%s4 + $0x8] sm:$0xff]
    %v393 = vld [vmem:[%s4 + $0x10] sm:$0xff]
    %v394 = vld [vmem:[%s4 + $0x18] sm:$0xff]
    %v395 = vld [vmem:[%s4 + $0x20] sm:$0xff]
    %v396 = vld [vmem:[%s4 + $0x28] sm:$0xff]
    %v397 = vld [vmem:[%s4 + $0x30] sm:$0xff]
    %v398 = vld [vmem:[%s4 + $0x38] sm:$0xff]
    %v399 = vld [vmem:[%s4 + $0x40] sm:$0xff]
    %v400 = vld [vmem:[%s4 + $0x48] sm:$0xff]
    %v401 = vld [vmem:[%s4 + $0x50] sm:$0xff]
    %v402 = vld [vmem:[%s4 + $0x58] sm:$0xff]
    %v403 = vld [vmem:[%s4 + $0x60] sm:$0xff]
    %v404 = vld [vmem:[%s4 + $0x68] sm:$0xff]
    %v405 = vld [vmem:[%s4 + $0x70] sm:$0xff]
    %v406 = vld [vmem:[%s4 + $0x78] sm:$0xff]
    %408 = vset.pattern.permute.xlu0 0
    %409 = vperm.xlu0 %408, %v391
    %v410 = vpop.permute.xlu0 %409
    %413 = vset.pattern.permute.xlu0 0
    %414 = vperm.xlu0 %413, %v392
    %v415 = vpop.permute.xlu0 %414
    %418 = vset.pattern.permute.xlu0 0
    %419 = vperm.xlu0 %418, %v393
    %v420 = vpop.permute.xlu0 %419
    %423 = vset.pattern.permute.xlu0 0
    %424 = vperm.xlu0 %423, %v394
    %v425 = vpop.permute.xlu0 %424
    %428 = vset.pattern.permute.xlu0 0
    %429 = vperm.xlu0 %428, %v395
    %v430 = vpop.permute.xlu0 %429
    %433 = vset.pattern.permute.xlu0 0
    %434 = vperm.xlu0 %433, %v396
    %v435 = vpop.permute.xlu0 %434
    %438 = vset.pattern.permute.xlu0 0
    %439 = vperm.xlu0 %438, %v397
    %v440 = vpop.permute.xlu0 %439
    %443 = vset.pattern.permute.xlu0 0
    %444 = vperm.xlu0 %443, %v398
    %v445 = vpop.permute.xlu0 %444
    %448 = vset.pattern.permute.xlu0 0
    %449 = vperm.xlu0 %448, %v399
    %v450 = vpop.permute.xlu0 %449
    %453 = vset.pattern.permute.xlu0 0
    %454 = vperm.xlu0 %453, %v400
    %v455 = vpop.permute.xlu0 %454
    %458 = vset.pattern.permute.xlu0 0
    %459 = vperm.xlu0 %458, %v401
    %v460 = vpop.permute.xlu0 %459
    %463 = vset.pattern.permute.xlu0 0
    %464 = vperm.xlu0 %463, %v402
    %v465 = vpop.permute.xlu0 %464
    %468 = vset.pattern.permute.xlu0 0
    %469 = vperm.xlu0 %468, %v403
    %v470 = vpop.permute.xlu0 %469
    %473 = vset.pattern.permute.xlu0 0
    %474 = vperm.xlu0 %473, %v404
    %v475 = vpop.permute.xlu0 %474
    %478 = vset.pattern.permute.xlu0 0
    %479 = vperm.xlu0 %478, %v405
    %v480 = vpop.permute.xlu0 %479
    %483 = vset.pattern.permute.xlu0 0
    %484 = vperm.xlu0 %483, %v406
    %v485 = vpop.permute.xlu0 %484
    %487 = vmatpush.msra.mxu0 %v374
    %488 = vmatpush.msra.mxu0 %v373
    %489 = vmatpush.msra.mxu0 %v372
    %490 = vmatpush.msra.mxu0 %v371
    %491 = vmatpush.msra.mxu0 %v370
    %492 = vmatpush.msra.mxu0 %v369
    %493 = vmatpush.msra.mxu0 %v368
    %494 = vmatpush.msra.mxu0 %v367
    %495 = vmatpush.msra.mxu0 %v366
    %496 = vmatpush.msra.mxu0 %v365
    %497 = vmatpush.msra.mxu0 %v364
    %498 = vmatpush.msra.mxu0 %v363
    %499 = vmatpush.msra.mxu0 %v362
    %500 = vmatpush.msra.mxu0 %v361
    %501 = vmatpush.msra.mxu0 %v360
    %502 = vmatpush.msra.mxu0 %v359
    %503 = vmatmul.f32.gmra.mxu0 %v375
    %v504 = vpop.f32.mrf.mxu0
    %v505 = vadd.f32 %v410, %v504
    %506 = vmatmul.f32.gmra.mxu0 %v376
    %v507 = vpop.f32.mrf.mxu0
    %v508 = vadd.f32 %v415, %v507
    %509 = vmatmul.f32.gmra.mxu0 %v377
    %v510 = vpop.f32.mrf.mxu0
    %v511 = vadd.f32 %v420, %v510
    %512 = vmatmul.f32.gmra.mxu0 %v378
    %v513 = vpop.f32.mrf.mxu0
    %v514 = vadd.f32 %v425, %v513
    %515 = vmatmul.f32.gmra.mxu0 %v379
    %v516 = vpop.f32.mrf.mxu0
    %v517 = vadd.f32 %v430, %v516
    %518 = vmatmul.f32.gmra.mxu0 %v380
    %v519 = vpop.f32.mrf.mxu0
    %v520 = vadd.f32 %v435, %v519
    %521 = vmatmul.f32.gmra.mxu0 %v381
    %v522 = vpop.f32.mrf.mxu0
    %v523 = vadd.f32 %v440, %v522
    %524 = vmatmul.f32.gmra.mxu0 %v382
    %v525 = vpop.f32.mrf.mxu0
    %v526 = vadd.f32 %v445, %v525
    %527 = vmatmul.f32.gmra.mxu0 %v383
    %v528 = vpop.f32.mrf.mxu0
    %v529 = vadd.f32 %v450, %v528
    %530 = vmatmul.f32.gmra.mxu0 %v384
    %v531 = vpop.f32.mrf.mxu0
    %v532 = vadd.f32 %v455, %v531
    %533 = vmatmul.f32.gmra.mxu0 %v385
    %v534 = vpop.f32.mrf.mxu0
    %v535 = vadd.f32 %v460, %v534
    %536 = vmatmul.f32.gmra.mxu0 %v386
    %v537 = vpop.f32.mrf.mxu0
    %v538 = vadd.f32 %v465, %v537
    %539 = vmatmul.f32.gmra.mxu0 %v387
    %v540 = vpop.f32.mrf.mxu0
    %v541 = vadd.f32 %v470, %v540
    %542 = vmatmul.f32.gmra.mxu0 %v388
    %v543 = vpop.f32.mrf.mxu0
    %v544 = vadd.f32 %v475, %v543
    %545 = vmatmul.f32.gmra.mxu0 %v389
    %v546 = vpop.f32.mrf.mxu0
    %v547 = vadd.f32 %v480, %v546
    %548 = vmatmul.f32.gmra.mxu0 %v390
    %v549 = vpop.f32.mrf.mxu0
    %v550 = vadd.f32 %v485, %v549
    %551 = vdwg.mxu0
    %v552 = vtanh.pop %v505
    %v553 = vtanh.pop %v508
    %v554 = vtanh.pop %v511
    %v555 = vtanh.pop %v514
    %v556 = vtanh.pop %v517
    %v557 = vtanh.pop %v520
    %v558 = vtanh.pop %v523
    %v559 = vtanh.pop %v526
    %v560 = vtanh.pop %v529
    %v561 = vtanh.pop %v532
    %v562 = vtanh.pop %v535
    %v563 = vtanh.pop %v538
    %v564 = vtanh.pop %v541
    %v565 = vtanh.pop %v544
    %v566 = vtanh.pop %v547
    %v567 = vtanh.pop %v550
    %v568 = vld [vmem:[%s5] sm:$0xff]
    %v569 = vld [vmem:[%s5 + $0x8] sm:$0xff]
    %v570 = vld [vmem:[%s5 + $0x10] sm:$0xff]
    %v571 = vld [vmem:[%s5 + $0x18] sm:$0xff]
    %v572 = vld [vmem:[%s5 + $0x20] sm:$0xff]
    %v573 = vld [vmem:[%s5 + $0x28] sm:$0xff]
    %v574 = vld [vmem:[%s5 + $0x30] sm:$0xff]
    %v575 = vld [vmem:[%s5 + $0x38] sm:$0xff]
    %v576 = vld [vmem:[%s5 + $0x40] sm:$0xff]
    %v577 = vld [vmem:[%s5 + $0x48] sm:$0xff]
    %v578 = vld [vmem:[%s5 + $0x50] sm:$0xff]
    %v579 = vld [vmem:[%s5 + $0x58] sm:$0xff]
    %v580 = vld [vmem:[%s5 + $0x60] sm:$0xff]
    %v581 = vld [vmem:[%s5 + $0x68] sm:$0xff]
    %v582 = vld [vmem:[%s5 + $0x70] sm:$0xff]
    %v583 = vld [vmem:[%s5 + $0x78] sm:$0xff]
    %v584 = vld [vmem:[%s6] sm:$0xff]
    %v585 = vld [vmem:[%s6 + $0x8] sm:$0xff]
    %v586 = vld [vmem:[%s6 + $0x10] sm:$0xff]
    %v587 = vld [vmem:[%s6 + $0x18] sm:$0xff]
    %v588 = vld [vmem:[%s6 + $0x20] sm:$0xff]
    %v589 = vld [vmem:[%s6 + $0x28] sm:$0xff]
    %v590 = vld [vmem:[%s6 + $0x30] sm:$0xff]
    %v591 = vld [vmem:[%s6 + $0x38] sm:$0xff]
    %v592 = vld [vmem:[%s6 + $0x40] sm:$0xff]
    %v593 = vld [vmem:[%s6 + $0x48] sm:$0xff]
    %v594 = vld [vmem:[%s6 + $0x50] sm:$0xff]
    %v595 = vld [vmem:[%s6 + $0x58] sm:$0xff]
    %v596 = vld [vmem:[%s6 + $0x60] sm:$0xff]
    %v597 = vld [vmem:[%s6 + $0x68] sm:$0xff]
    %v598 = vld [vmem:[%s6 + $0x70] sm:$0xff]
    %v599 = vld [vmem:[%s6 + $0x78] sm:$0xff]
    %601 = vset.pattern.permute.xlu0 0
    %602 = vperm.xlu0 %601, %v584
    %v603 = vpop.permute.xlu0 %602
    %606 = vset.pattern.permute.xlu0 0
    %607 = vperm.xlu0 %606, %v585
    %v608 = vpop.permute.xlu0 %607
    %611 = vset.pattern.permute.xlu0 0
    %612 = vperm.xlu0 %611, %v586
    %v613 = vpop.permute.xlu0 %612
    %616 = vset.pattern.permute.xlu0 0
    %617 = vperm.xlu0 %616, %v587
    %v618 = vpop.permute.xlu0 %617
    %621 = vset.pattern.permute.xlu0 0
    %622 = vperm.xlu0 %621, %v588
    %v623 = vpop.permute.xlu0 %622
    %626 = vset.pattern.permute.xlu0 0
    %627 = vperm.xlu0 %626, %v589
    %v628 = vpop.permute.xlu0 %627
    %631 = vset.pattern.permute.xlu0 0
    %632 = vperm.xlu0 %631, %v590
    %v633 = vpop.permute.xlu0 %632
    %636 = vset.pattern.permute.xlu0 0
    %637 = vperm.xlu0 %636, %v591
    %v638 = vpop.permute.xlu0 %637
    %641 = vset.pattern.permute.xlu0 0
    %642 = vperm.xlu0 %641, %v592
    %v643 = vpop.permute.xlu0 %642
    %646 = vset.pattern.permute.xlu0 0
    %647 = vperm.xlu0 %646, %v593
    %v648 = vpop.permute.xlu0 %647
    %651 = vset.pattern.permute.xlu0 0
    %652 = vperm.xlu0 %651, %v594
    %v653 = vpop.permute.xlu0 %652
    %656 = vset.pattern.permute.xlu0 0
    %657 = vperm.xlu0 %656, %v595
    %v658 = vpop.permute.xlu0 %657
    %661 = vset.pattern.permute.xlu0 0
    %662 = vperm.xlu0 %661, %v596
    %v663 = vpop.permute.xlu0 %662
    %666 = vset.pattern.permute.xlu0 0
    %667 = vperm.xlu0 %666, %v597
    %v668 = vpop.permute.xlu0 %667
    %671 = vset.pattern.permute.xlu0 0
    %672 = vperm.xlu0 %671, %v598
    %v673 = vpop.permute.xlu0 %672
    %676 = vset.pattern.permute.xlu0 0
    %677 = vperm.xlu0 %676, %v599
    %v678 = vpop.permute.xlu0 %677
    %680 = vmatpush.msra.mxu0 %v567
    %681 = vmatpush.msra.mxu0 %v566
    %682 = vmatpush.msra.mxu0 %v565
    %683 = vmatpush.msra.mxu0 %v564
    %684 = vmatpush.msra.mxu0 %v563
    %685 = vmatpush.msra.mxu0 %v562
    %686 = vmatpush.msra.mxu0 %v561
    %687 = vmatpush.msra.mxu0 %v560
    %688 = vmatpush.msra.mxu0 %v559
    %689 = vmatpush.msra.mxu0 %v558
    %690 = vmatpush.msra.mxu0 %v557
    %691 = vmatpush.msra.mxu0 %v556
    %692 = vmatpush.msra.mxu0 %v555
    %693 = vmatpush.msra.mxu0 %v554
    %694 = vmatpush.msra.mxu0 %v553
    %695 = vmatpush.msra.mxu0 %v552
    %696 = vmatmul.f32.gmra.mxu0 %v568
    %v697 = vpop.f32.mrf.mxu0
    %v698 = vadd.f32 %v603, %v697
    %699 = vmatmul.f32.gmra.mxu0 %v569
    %v700 = vpop.f32.mrf.mxu0
    %v701 = vadd.f32 %v608, %v700
    %702 = vmatmul.f32.gmra.mxu0 %v570
    %v703 = vpop.f32.mrf.mxu0
    %v704 = vadd.f32 %v613, %v703
    %705 = vmatmul.f32.gmra.mxu0 %v571
    %v706 = vpop.f32.mrf.mxu0
    %v707 = vadd.f32 %v618, %v706
    %708 = vmatmul.f32.gmra.mxu0 %v572
    %v709 = vpop.f32.mrf.mxu0
    %v710 = vadd.f32 %v623, %v709
    %711 = vmatmul.f32.gmra.mxu0 %v573
    %v712 = vpop.f32.mrf.mxu0
    %v713 = vadd.f32 %v628, %v712
    %714 = vmatmul.f32.gmra.mxu0 %v574
    %v715 = vpop.f32.mrf.mxu0
    %v716 = vadd.f32 %v633, %v715
    %717 = vmatmul.f32.gmra.mxu0 %v575
    %v718 = vpop.f32.mrf.mxu0
    %v719 = vadd.f32 %v638, %v718
    %720 = vmatmul.f32.gmra.mxu0 %v576
    %v721 = vpop.f32.mrf.mxu0
    %v722 = vadd.f32 %v643, %v721
    %723 = vmatmul.f32.gmra.mxu0 %v577
    %v724 = vpop.f32.mrf.mxu0
    %v725 = vadd.f32 %v648, %v724
    %726 = vmatmul.f32.gmra.mxu0 %v578
    %v727 = vpop.f32.mrf.mxu0
    %v728 = vadd.f32 %v653, %v727
    %729 = vmatmul.f32.gmra.mxu0 %v579
    %v730 = vpop.f32.mrf.mxu0
    %v731 = vadd.f32 %v658, %v730
    %732 = vmatmul.f32.gmra.mxu0 %v580
    %v733 = vpop.f32.mrf.mxu0
    %v734 = vadd.f32 %v663, %v733
    %735 = vmatmul.f32.gmra.mxu0 %v581
    %v736 = vpop.f32.mrf.mxu0
    %v737 = vadd.f32 %v668, %v736
    %738 = vmatmul.f32.gmra.mxu0 %v582
    %v739 = vpop.f32.mrf.mxu0
    %v740 = vadd.f32 %v673, %v739
    %741 = vmatmul.f32.gmra.mxu0 %v583
    %v742 = vpop.f32.mrf.mxu0
    %v743 = vadd.f32 %v678, %v742
    %744 = vdwg.mxu0
    %v745 = vtanh.pop %v698
    %v746 = vtanh.pop %v701
    %v747 = vtanh.pop %v704
    %v748 = vtanh.pop %v707
    %v749 = vtanh.pop %v710
    %v750 = vtanh.pop %v713
    %v751 = vtanh.pop %v716
    %v752 = vtanh.pop %v719
    %v753 = vtanh.pop %v722
    %v754 = vtanh.pop %v725
    %v755 = vtanh.pop %v728
    %v756 = vtanh.pop %v731
    %v757 = vtanh.pop %v734
    %v758 = vtanh.pop %v737
    %v759 = vtanh.pop %v740
    %v760 = vtanh.pop %v743
    %v761 = vld [vmem:[%s7] sm:$0xff]
    %v762 = vld [vmem:[%s7 + $0x8] sm:$0xff]
    %v763 = vld [vmem:[%s7 + $0x10] sm:$0xff]
    %v764 = vld [vmem:[%s7 + $0x18] sm:$0xff]
    %v765 = vld [vmem:[%s7 + $0x20] sm:$0xff]
    %v766 = vld [vmem:[%s7 + $0x28] sm:$0xff]
    %v767 = vld [vmem:[%s7 + $0x30] sm:$0xff]
    %v768 = vld [vmem:[%s7 + $0x38] sm:$0xff]
    %v769 = vld [vmem:[%s7 + $0x40] sm:$0xff]
    %v770 = vld [vmem:[%s7 + $0x48] sm:$0xff]
    %v771 = vld [vmem:[%s7 + $0x50] sm:$0xff]
    %v772 = vld [vmem:[%s7 + $0x58] sm:$0xff]
    %v773 = vld [vmem:[%s7 + $0x60] sm:$0xff]
    %v774 = vld [vmem:[%s7 + $0x68] sm:$0xff]
    %v775 = vld [vmem:[%s7 + $0x70] sm:$0xff]
    %v776 = vld [vmem:[%s7 + $0x78] sm:$0xff]
    %778 = vset.pattern.permute.xlu0 0
    %779 = vperm.xlu0 %778, %v761
    %v780 = vpop.permute.xlu0 %779
    %783 = vset.pattern.permute.xlu0 0
    %784 = vperm.xlu0 %783, %v762
    %v785 = vpop.permute.xlu0 %784
    %788 = vset.pattern.permute.xlu0 0
    %789 = vperm.xlu0 %788, %v763
    %v790 = vpop.permute.xlu0 %789
    %793 = vset.pattern.permute.xlu0 0
    %794 = vperm.xlu0 %793, %v764
    %v795 = vpop.permute.xlu0 %794
    %798 = vset.pattern.permute.xlu0 0
    %799 = vperm.xlu0 %798, %v765
    %v800 = vpop.permute.xlu0 %799
    %803 = vset.pattern.permute.xlu0 0
    %804 = vperm.xlu0 %803, %v766
    %v805 = vpop.permute.xlu0 %804
    %808 = vset.pattern.permute.xlu0 0
    %809 = vperm.xlu0 %808, %v767
    %v810 = vpop.permute.xlu0 %809
    %813 = vset.pattern.permute.xlu0 0
    %814 = vperm.xlu0 %813, %v768
    %v815 = vpop.permute.xlu0 %814
    %818 = vset.pattern.permute.xlu0 0
    %819 = vperm.xlu0 %818, %v769
    %v820 = vpop.permute.xlu0 %819
    %823 = vset.pattern.permute.xlu0 0
    %824 = vperm.xlu0 %823, %v770
    %v825 = vpop.permute.xlu0 %824
    %828 = vset.pattern.permute.xlu0 0
    %829 = vperm.xlu0 %828, %v771
    %v830 = vpop.permute.xlu0 %829
    %833 = vset.pattern.permute.xlu0 0
    %834 = vperm.xlu0 %833, %v772
    %v835 = vpop.permute.xlu0 %834
    %838 = vset.pattern.permute.xlu0 0
    %839 = vperm.xlu0 %838, %v773
    %v840 = vpop.permute.xlu0 %839
    %843 = vset.pattern.permute.xlu0 0
    %844 = vperm.xlu0 %843, %v774
    %v845 = vpop.permute.xlu0 %844
    %848 = vset.pattern.permute.xlu0 0
    %849 = vperm.xlu0 %848, %v775
    %v850 = vpop.permute.xlu0 %849
    %853 = vset.pattern.permute.xlu0 0
    %854 = vperm.xlu0 %853, %v776
    %v855 = vpop.permute.xlu0 %854
    %v857 = vmul.f32 %v780, %v745
    %v858 = vmul.f32 %v785, %v746
    %v859 = vmul.f32 %v790, %v747
    %v860 = vmul.f32 %v795, %v748
    %v861 = vmul.f32 %v800, %v749
    %v862 = vmul.f32 %v805, %v750
    %v863 = vmul.f32 %v810, %v751
    %v864 = vmul.f32 %v815, %v752
    %v865 = vmul.f32 %v820, %v753
    %v866 = vmul.f32 %v825, %v754
    %v867 = vmul.f32 %v830, %v755
    %v868 = vmul.f32 %v835, %v756
    %v869 = vmul.f32 %v840, %v757
    %v870 = vmul.f32 %v845, %v758
    %v871 = vmul.f32 %v850, %v759
    %v872 = vmul.f32 %v855, %v760
    %v873 = vadd.f32 %v857, %v858
    %v874 = vadd.f32 %v873, %v859
    %v875 = vadd.f32 %v874, %v860
    %v876 = vadd.f32 %v875, %v861
    %v877 = vadd.f32 %v876, %v862
    %v878 = vadd.f32 %v877, %v863
    %v879 = vadd.f32 %v878, %v864
    %v880 = vadd.f32 %v879, %v865
    %v881 = vadd.f32 %v880, %v866
    %v882 = vadd.f32 %v881, %v867
    %v883 = vadd.f32 %v882, %v868
    %v884 = vadd.f32 %v883, %v869
    %v885 = vadd.f32 %v884, %v870
    %v886 = vadd.f32 %v885, %v871
    %v887 = vadd.f32 %v886, %v872
    %v888 = vrot.slane %v887, 4
    %v889 = vadd.f32 %v887, %v888
    %v890 = vrot.slane %v889, 2
    %v891 = vadd.f32 %v889, %v890
    %v892 = vrot.slane %v891, 1
    %v893 = vadd.f32 %v891, %v892
    %v894 = vld [vmem:[#allocation2] sm:$0x1]
    %896 = vset.pattern.permute.xlu0 0
    %897 = vperm.xlu0 %896, %v894
    %v898 = vpop.permute.xlu0 %897
    %v900 = vperm.slane %v898, 0
    %v901 = vadd.f32 %v893, %v900
    %902 = vst [vmem:[#allocation3] sm:$0x1] %v901
    // Predicated region
    $region38: #{tpu_custom_call.1} parent=1 // pred_check
      _
    $region39: #{tpu_custom_call.1} parent=1 // pred_check_branch
      %904 = sbr.rel (0) target = $region41
    $region40: #{tpu_custom_call.1} parent=1 // pred_region
      %906 = vsyncadd [#allocation4], 0
      %s908 = sshll.u32 [#allocation3], 4
      %s909 = int_to_ptr.vmem [resolvable:$true] %s908
      %s910 = sshll.u32 %s9, 4
      %s911 = int_to_ptr.hbm [resolvable:$true] %s910
      %913 = dma.vmem_to_hbm [thread:$0]  %s909, 16, %s911, [#allocation4]
    $region41: #{tpu_custom_call.1} parent=1 // pred_fallthru
      _
    // Predicated region
    $region42: #{tpu_custom_call.1} parent=1 // pred_check
      _
    $region43: #{tpu_custom_call.1} parent=1 // pred_check_branch
      %915 = sbr.rel (0) target = $region45
    $region44: #{tpu_custom_call.1} parent=1 // pred_region
      %917 = dma.done [#allocation4], 16
    $region45: #{tpu_custom_call.1} parent=1 // pred_fallthru
      _
    %918 = vsyncpa [#allocation4], 1

</llo_original>
